<compile_context>
chip_gen: v6e
topology: v6e:2x2x1
jax: 0.10.0
libtpu: 0.0.40
codegen_flags: <defaults>
</compile_context>

<pallas_src>
import functools

import jax
import jax.numpy as jnp
from jax.experimental import pallas as pl
from jax.experimental.pallas import tpu as pltpu


# ----------------------------- Pallas kernels --------------------------------
def gcn_fused_kernel(adj_ref, dis_ref, xw1_ref, b1_ref, w23_ref, b23_ref, out_ref):
    """Small-N fast path: whole GCN forward in one call, everything resident.

    L @ R = (D^-1/2 A D^-1/2 + I) @ R = dis * (A @ (dis * R)) + R
    """
    a = adj_ref[...]            # [N, N] f32
    dis = dis_ref[...]          # [N, 1] f32
    xw1 = xw1_ref[...]          # [N, H] f32 (hoisted X @ W1)

    # Layer 1: H1 = relu(L @ (X W1) + b1)
    h1 = (dis * jnp.dot(a, dis * xw1, preferred_element_type=jnp.float32)
          + xw1 + b1_ref[...])
    h1 = jnp.maximum(h1, 0.0)

    # Layer 2 + folded final Linear: out = L @ (H1 W23) + b23
    hw = jnp.dot(h1, w23_ref[...], preferred_element_type=jnp.float32)   # [N, O]
    out = (dis * jnp.dot(a, dis * hw, preferred_element_type=jnp.float32)
           + hw + b23_ref[...])
    out_ref[...] = out.astype(out_ref.dtype)


def gcn_prop_kernel(adj_ref, rs_ref, r_ref, dis_ref, b_ref, out_ref, acc_ref,
                    *, relu, n_nodes, tile_k):
    """One propagation, row+contraction tiled.

    out[rows] = dis[rows] * sum_k(A[rows, k] @ (dis*R)[k]) + R[rows] + b
    adj_ref : (tm, tk)  streamed raw adjacency tile (bf16/f32 - fed to MXU as-is)
    rs_ref  : (tk, H)   pre-scaled thin projection block (dis * R)
    r_ref   : (tm, H)   identity-term R row block
    dis_ref : (tm, 1)   row scaling D^-1/2
    acc_ref : (tm, H)   f32 accumulator scratch, carried across the k axis
    """
    k = pl.program_id(1)

    @pl.when(k == 0)
    def _init():
        acc_ref[...] = jnp.zeros_like(acc_ref)

    a = adj_ref[...]
    rs = rs_ref[...]
    if n_nodes % tile_k != 0:
        # Tail block on the contraction axis: zero BOTH operands past N so the
        # unspecified out-of-bounds padding contributes exactly 0 * 0.
        base = k * tile_k
        col = jax.lax.broadcasted_iota(jnp.int32, a.shape, 1) + base
        a = jnp.where(col < n_nodes, a, jnp.zeros_like(a))
        row = jax.lax.broadcasted_iota(jnp.int32, rs.shape, 0) + base
        rs = jnp.where(row < n_nodes, rs, jnp.zeros_like(rs))

    acc_ref[...] += jnp.dot(a, rs, preferred_element_type=jnp.float32)

    @pl.when(k == pl.num_programs(1) - 1)
    def _finalize():
        z = dis_ref[...] * acc_ref[...] + r_ref[...] + b_ref[...]
        if relu:
            z = jnp.maximum(z, 0.0)
        out_ref[...] = z.astype(out_ref.dtype)


# ------------------------------ wrappers --------------------------------------
def _round_up(x, m):
    return ((x + m - 1) // m) * m


def _propagate_tiled(adj_s, rs, r, dis, b, *, relu, tm, tk, vmem_limit_bytes):
    """out = L @ R + b (opt relu), with L applied implicitly from raw adjacency."""
    n = adj_s.shape[0]
    h = rs.shape[1]
    assert tm % 8 == 0 and tk % 128 == 0, "tile sizes must respect (8,128) tiling"
    grid = (pl.cdiv(n, tm), pl.cdiv(n, tk))
    kernel = functools.partial(gcn_prop_kernel, relu=relu, n_nodes=n, tile_k=tk)
    return pl.pallas_call(
        kernel,
        out_shape=jax.ShapeDtypeStruct((n, h), jnp.float32),
        grid_spec=pltpu.PrefetchScalarGridSpec(
            num_scalar_prefetch=0,
            grid=grid,
            in_specs=[
                # Streamed N^2 operand: raw adjacency, (rows, contraction) tiles.
                # (pipeline_mode=pl.Buffered(3) only if profiling shows exposed DMA.)
                pl.BlockSpec((tm, tk), lambda i, k: (i, k)),
                pl.BlockSpec((tk, h), lambda i, k: (k, 0)),    # dis * R (thin)
                pl.BlockSpec((tm, h), lambda i, k: (i, 0)),    # R (identity term)
                pl.BlockSpec((tm, 1), lambda i, k: (i, 0)),    # D^-1/2 rows
                pl.BlockSpec((1, h), lambda i, k: (0, 0)),     # bias
            ],
            out_specs=pl.BlockSpec((tm, h), lambda i, k: (i, 0)),
            scratch_shapes=[pltpu.VMEM((tm, h), jnp.float32)],
        ),
        compiler_params=pltpu.CompilerParams(
            dimension_semantics=("parallel", "arbitrary"),
            vmem_limit_bytes=vmem_limit_bytes,
        ),
    )(adj_s, rs, r, dis, b)


def gcn_forward(adj_mat, X, params, *, small_n_threshold=1024, tile_rows=512,
                tile_k=2048, stream_dtype=jnp.bfloat16, vmem_limit_bytes=None):
    """adj_mat: [N, N], X: [N, in_feats].  Returns [N, out_feats] f32."""
    f32 = jnp.float32
    N = adj_mat.shape[0]
    adj_mat = adj_mat.astype(f32)
    X = X.astype(f32)

    # D^{-1/2}, factored OUT of the streamed matrix: the raw 0/1 adjacency stays
    # exactly representable at low precision; the scaling stays f32.
    deg = jnp.sum(adj_mat, axis=0)
    # Clamp isolated nodes (reference would produce inf/NaN via deg**-0.5).
    dis = jnp.where(deg > 0.0, jax.lax.rsqrt(deg), 0.0).astype(f32)[:, None]  # [N,1]

    # Fold the trailing nn.Linear into GCN layer 2 (no nonlinearity between).
    w23 = params["w2"] @ params["w3"]                    # [H, out]
    b23 = params["b2"] @ params["w3"] + params["b3"]     # [1, out]

    # Hoisted thin projection X @ W1 (done once, O(N*F*H), plain XLA).
    xw1 = X @ params["w1"]                               # [N, H]

    if N <= max(small_n_threshold, 8):
        # Single fused launch: normalization + both propagations + ReLU + Linear.
        return pl.pallas_call(
            gcn_fused_kernel,
            out_shape=jax.ShapeDtypeStruct((N, w23.shape[1]), f32),
            compiler_params=pltpu.CompilerParams(vmem_limit_bytes=vmem_limit_bytes),
        )(adj_mat, dis, xw1, params["b1"], w23, b23)

    # ---- large-N streamed path ------------------------------------------------
    # VMEM use is bounded by the tiles (not N): bf16 A tile of 512x2048 is 2 MiB,
    # 4 MiB double-buffered - safe under v5e/v6e/v7x default scoped limits.
    tm = min(tile_rows, _round_up(N, 8))
    tk = min(tile_k, _round_up(N, 128))
    adj_s = adj_mat.astype(stream_dtype)     # bf16 is exact for a 0/1 adjacency

    # Pass 1: H1 = relu(L @ (X W1) + b1)
    h1 = _propagate_tiled(adj_s, (dis * xw1).astype(stream_dtype), xw1,
                          dis, params["b1"], relu=True,
                          tm=tm, tk=tk, vmem_limit_bytes=vmem_limit_bytes)
    # Pass 2: out = L @ (H1 W23) + b23   (thin projection hoisted to plain XLA)
    hw = h1 @ w23                                        # [N, out]
    out = _propagate_tiled(adj_s, (dis * hw).astype(stream_dtype), hw,
                           dis, b23, relu=False,
                           tm=tm, tk=tk, vmem_limit_bytes=vmem_limit_bytes)
    return out


# ------------------------- deterministic params -------------------------------
def init_params(key, in_feats=36, out_feats=2, n_hidden=6):
    k1, k2, k3, k4, k5, k6 = jax.random.split(key, 6)
    # GCNLayer linear weights use nn.init.uniform_ (U[0,1)); biases use default
    # Linear init U[-1/sqrt(fan_in), 1/sqrt(fan_in)].  Stored as [in, out].
    w1 = jax.random.uniform(k1, (in_feats, n_hidden), jnp.float32)
    b1 = jax.random.uniform(k2, (1, n_hidden), jnp.float32,
                            minval=-1.0 / jnp.sqrt(in_feats),
                            maxval=1.0 / jnp.sqrt(in_feats))
    w2 = jax.random.uniform(k3, (n_hidden, out_feats), jnp.float32)
    b2 = jax.random.uniform(k4, (1, out_feats), jnp.float32,
                            minval=-1.0 / jnp.sqrt(n_hidden),
                            maxval=1.0 / jnp.sqrt(n_hidden))
    lim = 1.0 / jnp.sqrt(out_feats)
    w3 = jax.random.uniform(k5, (out_feats, out_feats), jnp.float32,
                            minval=-lim, maxval=lim)
    b3 = jax.random.uniform(k6, (1, out_feats), jnp.float32,
                            minval=-lim, maxval=lim)
    return {"w1": w1, "b1": b1, "w2": w2, "b2": b2, "w3": w3, "b3": b3}


# ----------------------------- reference (JAX) --------------------------------
def gcn_reference(adj_mat, X, params):
    """Mirrors the PyTorch module exactly (diag matmuls, un-reassociated)."""
    N = adj_mat.shape[0]
    deg_mat = jnp.diag(jnp.power(jnp.sum(adj_mat, axis=0), -0.5))
    L = deg_mat @ adj_mat @ deg_mat + jnp.eye(N, dtype=adj_mat.dtype)
    Z = jnp.maximum(L @ X @ params["w1"] + params["b1"], 0.0)
    Z = L @ Z @ params["w2"] + params["b2"]
    return Z @ params["w3"] + params["b3"]


def make_adj(key, n):
    """Symmetric 0/1 adjacency with self-loops (every degree > 0)."""
    a = (jax.random.uniform(key, (n, n)) < 0.4).astype(jnp.float32)
    adj = jnp.clip(a + a.T, 0.0, 1.0)
    return adj.at[jnp.arange(n), jnp.arange(n)].set(1.0)


if __name__ == "__main__":
    key = jax.random.PRNGKey(0)
    k_adj, k_x, k_p, k_adj2, k_x2 = jax.random.split(key, 5)

    N_NODES, IN_FEATS, OUT_FEATS, N_HIDDEN = 8, 36, 2, 6

    adj = make_adj(k_adj, N_NODES)
    X = jax.random.normal(k_x, (N_NODES, IN_FEATS), jnp.float32)
    params = init_params(k_p, IN_FEATS, OUT_FEATS, N_HIDDEN)

    # Small-N fused fast path (exercises the toy size from the module).
    out = jax.block_until_ready(gcn_forward(adj, X, params))
    ref = gcn_reference(adj, X, params)
    assert out.shape == (N_NODES, OUT_FEATS)
    assert jnp.allclose(out, ref, atol=1e-4, rtol=1e-4), "fused path mismatch"

    # Streamed large-N path (bf16 adjacency, fused normalization, row +
    # contraction tiling with tail masking).  N chosen so both the row tile
    # and the contraction tile have partial tail blocks.
    N_BIG = 608
    adj_b = make_adj(k_adj2, N_BIG)
    X_b = jax.random.normal(k_x2, (N_BIG, IN_FEATS), jnp.float32)
    out_b = jax.block_until_ready(
        gcn_forward(adj_b, X_b, params, small_n_threshold=0,
                    tile_rows=256, tile_k=512))
    ref_b = gcn_reference(adj_b, X_b, params)
    assert out_b.shape == (N_BIG, OUT_FEATS)
    assert jnp.allclose(out_b, ref_b, atol=5e-2, rtol=5e-2), "tiled path mismatch"

    print("KERNEL_OK")
</pallas_src>

<mosaic_0001>
module attributes {stable_mosaic.version = 11 : i64} {
  func.func @gcn_fused_kernel(%arg0: memref<8x8xf32, #tpu.memory_space<vmem>>, %arg1: memref<8x1xf32, #tpu.memory_space<vmem>>, %arg2: memref<8x6xf32, #tpu.memory_space<vmem>>, %arg3: memref<1x6xf32, #tpu.memory_space<vmem>>, %arg4: memref<6x2xf32, #tpu.memory_space<vmem>>, %arg5: memref<1x2xf32, #tpu.memory_space<vmem>>, %arg6: memref<8x2xf32, #tpu.memory_space<vmem>>) attributes {dimension_semantics = [], scalar_prefetch = 0 : i64, scratch_operands = 0 : i64, tpu.core_type = #tpu.core_type<tc>} {
    %c0 = arith.constant 0 : index
    %c0_0 = arith.constant 0 : index
    %0 = vector.load %arg0[%c0, %c0_0] : memref<8x8xf32, #tpu.memory_space<vmem>>, vector<8x8xf32>
    %c0_1 = arith.constant 0 : index
    %c0_2 = arith.constant 0 : index
    %1 = vector.load %arg1[%c0_1, %c0_2] : memref<8x1xf32, #tpu.memory_space<vmem>>, vector<8x1xf32>
    %c0_3 = arith.constant 0 : index
    %c0_4 = arith.constant 0 : index
    %2 = vector.load %arg2[%c0_3, %c0_4] : memref<8x6xf32, #tpu.memory_space<vmem>>, vector<8x6xf32>
    %3 = vector.broadcast %1 : vector<8x1xf32> to vector<8x6xf32>
    %4 = arith.mulf %3, %2 : vector<8x6xf32>
    %cst = arith.constant dense<0.000000e+00> : vector<8x6xf32>
    %5 = tpu.matmul %0, %4, %cst {dimension_numbers = #tpu.dot_dimension_numbers<[1], [0], [0], [1], [0, 0, 1, 1], [], []>} : vector<8x8xf32>, vector<8x6xf32>, vector<8x6xf32> -> vector<8x6xf32>
    %6 = vector.broadcast %1 : vector<8x1xf32> to vector<8x6xf32>
    %7 = arith.mulf %6, %5 : vector<8x6xf32>
    %8 = arith.addf %7, %2 : vector<8x6xf32>
    %c0_5 = arith.constant 0 : index
    %c0_6 = arith.constant 0 : index
    %9 = vector.load %arg3[%c0_5, %c0_6] : memref<1x6xf32, #tpu.memory_space<vmem>>, vector<1x6xf32>
    %10 = vector.broadcast %9 : vector<1x6xf32> to vector<8x6xf32>
    %11 = arith.addf %8, %10 : vector<8x6xf32>
    %cst_7 = arith.constant 0.000000e+00 : f32
    %12 = vector.broadcast %cst_7 : f32 to vector<8x6xf32>
    %13 = arith.maximumf %11, %12 : vector<8x6xf32>
    %c0_8 = arith.constant 0 : index
    %c0_9 = arith.constant 0 : index
    %14 = vector.load %arg4[%c0_8, %c0_9] : memref<6x2xf32, #tpu.memory_space<vmem>>, vector<6x2xf32>
    %cst_10 = arith.constant dense<0.000000e+00> : vector<8x2xf32>
    %15 = tpu.matmul %13, %14, %cst_10 {dimension_numbers = #tpu.dot_dimension_numbers<[1], [0], [0], [1], [0, 0, 1, 1], [], []>} : vector<8x6xf32>, vector<6x2xf32>, vector<8x2xf32> -> vector<8x2xf32>
    %16 = vector.broadcast %1 : vector<8x1xf32> to vector<8x2xf32>
    %17 = arith.mulf %16, %15 : vector<8x2xf32>
    %cst_11 = arith.constant dense<0.000000e+00> : vector<8x2xf32>
    %18 = tpu.matmul %0, %17, %cst_11 {dimension_numbers = #tpu.dot_dimension_numbers<[1], [0], [0], [1], [0, 0, 1, 1], [], []>} : vector<8x8xf32>, vector<8x2xf32>, vector<8x2xf32> -> vector<8x2xf32>
    %19 = vector.broadcast %1 : vector<8x1xf32> to vector<8x2xf32>
    %20 = arith.mulf %19, %18 : vector<8x2xf32>
    %21 = arith.addf %20, %15 : vector<8x2xf32>
    %c0_12 = arith.constant 0 : index
    %c0_13 = arith.constant 0 : index
    %22 = vector.load %arg5[%c0_12, %c0_13] : memref<1x2xf32, #tpu.memory_space<vmem>>, vector<1x2xf32>
    %23 = vector.broadcast %22 : vector<1x2xf32> to vector<8x2xf32>
    %24 = arith.addf %21, %23 : vector<8x2xf32>
    %c0_14 = arith.constant 0 : index
    %c0_15 = arith.constant 0 : index
    %25 = vector.load %arg6[%c0_14, %c0_15] : memref<8x2xf32, #tpu.memory_space<vmem>>, vector<8x2xf32>
    tpu.vector_store %arg6[%c0_14, %c0_15], %24 {strides = array<i32>} : memref<8x2xf32, #tpu.memory_space<vmem>>, vector<8x2xf32>,
    return
  }
}

</mosaic_0001>

<llo_original>
// kernel: tpu_custom_call.1
$region0: #{tpu_custom_call.1}
  #allocation0 [shape = 'u32[]', space=smem, size = 0x4, offset = 0x4, fixed_abs, tag = 'smem constant byte address 0x4 - core index']
  #allocation1 [shape = 'u32[144,128]{1,0:T(1,128)}', space=vmem, size = 0x12000, scoped, tag = 'internal scratch']
  %s0 = inlined_call_operand.vmem [shape: f32[8,8], index: 0, kind: input, shape index: {}]
  %s1 = inlined_call_operand.vmem [shape: f32[8,1], index: 1, kind: input, shape index: {}]
  %s2 = inlined_call_operand.vmem [shape: f32[8,6], index: 2, kind: input, shape index: {}]
  %s3 = inlined_call_operand.vmem [shape: f32[1,6], index: 3, kind: input, shape index: {}]
  %s4 = inlined_call_operand.vmem [shape: f32[6,2], index: 4, kind: input, shape index: {}]
  %s5 = inlined_call_operand.vmem [shape: f32[1,2], index: 5, kind: input, shape index: {}]
  %s6 = inlined_call_operand.vmem [shape: f32[8,2], index: 6, kind: output, shape index: {}]
  %s7 = sld [smem:[#allocation0]]
  $region34: #{tpu_custom_call.1} parent=0
    _
  %s9 = ssub.s32 1, %s7
  %s10 = scalar_select 0, %s9, %s7
  // Predicated region
  $region2: #{tpu_custom_call.1} parent=0 // pred_check
    _
  $region3: #{tpu_custom_call.1} parent=0 // pred_check_branch
    %12 = sbr.rel (0) target = $region5
  $region4: #{tpu_custom_call.1} parent=0 // pred_region
    _
  $region5: #{tpu_custom_call.1} parent=0 // pred_fallthru
    _
  // Predicated region
  $region6: #{tpu_custom_call.1} parent=0 // pred_check
    _
  $region7: #{tpu_custom_call.1} parent=0 // pred_check_branch
    %14 = sbr.rel (0) target = $region9
  $region8: #{tpu_custom_call.1} parent=0 // pred_region
    _
  $region9: #{tpu_custom_call.1} parent=0 // pred_fallthru
    _
  // Predicated region
  $region10: #{tpu_custom_call.1} parent=0 // pred_check
    _
  $region11: #{tpu_custom_call.1} parent=0 // pred_check_branch
    %16 = sbr.rel (0) target = $region13
  $region12: #{tpu_custom_call.1} parent=0 // pred_region
    _
  $region13: #{tpu_custom_call.1} parent=0 // pred_fallthru
    _
  // Predicated region
  $region14: #{tpu_custom_call.1} parent=0 // pred_check
    _
  $region15: #{tpu_custom_call.1} parent=0 // pred_check_branch
    %18 = sbr.rel (0) target = $region17
  $region16: #{tpu_custom_call.1} parent=0 // pred_region
    _
  $region17: #{tpu_custom_call.1} parent=0 // pred_fallthru
    _
  // Predicated region
  $region18: #{tpu_custom_call.1} parent=0 // pred_check
    _
  $region19: #{tpu_custom_call.1} parent=0 // pred_check_branch
    %20 = sbr.rel (0) target = $region21
  $region20: #{tpu_custom_call.1} parent=0 // pred_region
    _
  $region21: #{tpu_custom_call.1} parent=0 // pred_fallthru
    _
  // Predicated region
  $region22: #{tpu_custom_call.1} parent=0 // pred_check
    _
  $region23: #{tpu_custom_call.1} parent=0 // pred_check_branch
    %22 = sbr.rel (0) target = $region25
  $region24: #{tpu_custom_call.1} parent=0 // pred_region
    _
  $region25: #{tpu_custom_call.1} parent=0 // pred_fallthru
    _
  %v23 = vld [vmem:[%s0] sm:$0xff]
  %v24 = vld [vmem:[%s1] sm:$0xff]
  %v25 = vld [vmem:[%s2] sm:$0xff]
  %27 = vset.pattern.permute.xlu0 0
  %28 = vperm.xlu0 %27, %v24
  %v29 = vpop.permute.xlu0 %28
  %v31 = vmul.f32 %v29, %v25
  %vm32 = vcmask 64512
  %v34 = vsel %vm32, %v23, 0
  %36 = vmatprep.subr.mxu0 0.0
  %37 = vmatpush1.msra.mxu0 0.0
  %38 = vmatprep.subr.mxu0 0.0
  %39 = vmatpush1.msra.mxu0 0.0
  %40 = vmatprep.subr.mxu0 0.0
  %41 = vmatpush1.msra.mxu0 0.0
  %42 = vmatprep.subr.mxu0 0.0
  %43 = vmatpush1.msra.mxu0 0.0
  %44 = vmatprep.subr.mxu0 0.0
  %45 = vmatpush1.msra.mxu0 0.0
  %46 = vmatprep.subr.mxu0 0.0
  %47 = vmatpush1.msra.mxu0 0.0
  %48 = vmatprep.subr.mxu0 0.0
  %49 = vmatpush1.msra.mxu0 0.0
  %50 = vmatprep.subr.mxu0 0.0
  %51 = vmatpush1.msra.mxu0 0.0
  %52 = vmatprep.subr.mxu0 0.0
  %53 = vmatpush1.msra.mxu0 0.0
  %54 = vmatprep.subr.mxu0 0.0
  %55 = vmatpush1.msra.mxu0 0.0
  %56 = vmatprep.subr.mxu0 0.0
  %57 = vmatpush1.msra.mxu0 0.0
  %58 = vmatprep.subr.mxu0 0.0
  %59 = vmatpush1.msra.mxu0 0.0
  %60 = vmatprep.subr.mxu0 0.0
  %61 = vmatpush1.msra.mxu0 0.0
  %62 = vmatprep.subr.mxu0 0.0
  %63 = vmatpush1.msra.mxu0 0.0
  %64 = vmatprep.subr.mxu0 0.0
  %65 = vmatpush1.msra.mxu0 0.0
  %66 = vmatprep.subr.mxu0 0.0
  %67 = vmatpush1.msra.mxu0 %v31
  %68 = vmatprep.subr.mxu0 0.0
  %69 = vmatpush2.msra.mxu0 0.0
  %70 = vmatprep.subr.mxu0 0.0
  %71 = vmatpush2.msra.mxu0 0.0
  %72 = vmatprep.subr.mxu0 0.0
  %73 = vmatpush2.msra.mxu0 0.0
  %74 = vmatprep.subr.mxu0 0.0
  %75 = vmatpush2.msra.mxu0 0.0
  %76 = vmatprep.subr.mxu0 0.0
  %77 = vmatpush2.msra.mxu0 0.0
  %78 = vmatprep.subr.mxu0 0.0
  %79 = vmatpush2.msra.mxu0 0.0
  %80 = vmatprep.subr.mxu0 0.0
  %81 = vmatpush2.msra.mxu0 0.0
  %82 = vmatprep.subr.mxu0 0.0
  %83 = vmatpush2.msra.mxu0 0.0
  %84 = vmatprep.subr.mxu0 0.0
  %85 = vmatpush2.msra.mxu0 0.0
  %86 = vmatprep.subr.mxu0 0.0
  %87 = vmatpush2.msra.mxu0 0.0
  %88 = vmatprep.subr.mxu0 0.0
  %89 = vmatpush2.msra.mxu0 0.0
  %90 = vmatprep.subr.mxu0 0.0
  %91 = vmatpush2.msra.mxu0 0.0
  %92 = vmatprep.subr.mxu0 0.0
  %93 = vmatpush2.msra.mxu0 0.0
  %94 = vmatprep.subr.mxu0 0.0
  %95 = vmatpush2.msra.mxu0 0.0
  %96 = vmatprep.subr.mxu0 0.0
  %97 = vmatpush2.msra.mxu0 0.0
  %98 = vmatprep.subr.mxu0 0.0
  %99 = vmatpush2.msra.mxu0 0.0
  %100 = vmatprep.mubr.f32.mxu0 0.0
  %101 = vmatmul.mubr.f32.gmra.mxu0 %v34
  %v102 = vpop.f32.mrf.mxu0
  %v103 = vadd.f32 0.0, %v102
  %v104 = vpop.f32.mrf.mxu0
  %105 = vdwg.mxu0
  %v106 = vmul.f32 %v29, %v103
  %v107 = vadd.f32 %v106, %v25
  %v108 = vld [vmem:[%s3] sm:$0x1]
  %v110 = vlaneseq
  %v111 = vshrl.u32 %v110, 7
  %v112 = vsub.s32 0, %v111
  %v113 = vrot.slane %v108, %v112
  %v115 = vadd.f32 %v107, %v113
  %v116 = vmax.f32 %v115, 0.0
  %v117 = vld [vmem:[%s4] sm:$0x3f]
  %vm118 = vcmask 48128
  %v120 = vsel %vm118, %v116, 0
  %vm122 = vcmask 1045504
  %v124 = vsel %vm122, %v117, 0
  %126 = vmatprep.subr.mxu0 0.0
  %127 = vmatpush1.msra.mxu0 0.0
  %128 = vmatprep.subr.mxu0 0.0
  %129 = vmatpush1.msra.mxu0 0.0
  %130 = vmatprep.subr.mxu0 0.0
  %131 = vmatpush1.msra.mxu0 0.0
  %132 = vmatprep.subr.mxu0 0.0
  %133 = vmatpush1.msra.mxu0 0.0
  %134 = vmatprep.subr.mxu0 0.0
  %135 = vmatpush1.msra.mxu0 0.0
  %136 = vmatprep.subr.mxu0 0.0
  %137 = vmatpush1.msra.mxu0 0.0
  %138 = vmatprep.subr.mxu0 0.0
  %139 = vmatpush1.msra.mxu0 0.0
  %140 = vmatprep.subr.mxu0 0.0
  %141 = vmatpush1.msra.mxu0 0.0
  %142 = vmatprep.subr.mxu0 0.0
  %143 = vmatpush1.msra.mxu0 0.0
  %144 = vmatprep.subr.mxu0 0.0
  %145 = vmatpush1.msra.mxu0 0.0
  %146 = vmatprep.subr.mxu0 0.0
  %147 = vmatpush1.msra.mxu0 0.0
  %148 = vmatprep.subr.mxu0 0.0
  %149 = vmatpush1.msra.mxu0 0.0
  %150 = vmatprep.subr.mxu0 0.0
  %151 = vmatpush1.msra.mxu0 0.0
  %152 = vmatprep.subr.mxu0 0.0
  %153 = vmatpush1.msra.mxu0 0.0
  %154 = vmatprep.subr.mxu0 0.0
  %155 = vmatpush1.msra.mxu0 0.0
  %156 = vmatprep.subr.mxu0 0.0
  %157 = vmatpush1.msra.mxu0 %v124
  %158 = vmatprep.subr.mxu0 0.0
  %159 = vmatpush2.msra.mxu0 0.0
  %160 = vmatprep.subr.mxu0 0.0
  %161 = vmatpush2.msra.mxu0 0.0
  %162 = vmatprep.subr.mxu0 0.0
  %163 = vmatpush2.msra.mxu0 0.0
  %164 = vmatprep.subr.mxu0 0.0
  %165 = vmatpush2.msra.mxu0 0.0
  %166 = vmatprep.subr.mxu0 0.0
  %167 = vmatpush2.msra.mxu0 0.0
  %168 = vmatprep.subr.mxu0 0.0
  %169 = vmatpush2.msra.mxu0 0.0
  %170 = vmatprep.subr.mxu0 0.0
  %171 = vmatpush2.msra.mxu0 0.0
  %172 = vmatprep.subr.mxu0 0.0
  %173 = vmatpush2.msra.mxu0 0.0
  %174 = vmatprep.subr.mxu0 0.0
  %175 = vmatpush2.msra.mxu0 0.0
  %176 = vmatprep.subr.mxu0 0.0
  %177 = vmatpush2.msra.mxu0 0.0
  %178 = vmatprep.subr.mxu0 0.0
  %179 = vmatpush2.msra.mxu0 0.0
  %180 = vmatprep.subr.mxu0 0.0
  %181 = vmatpush2.msra.mxu0 0.0
  %182 = vmatprep.subr.mxu0 0.0
  %183 = vmatpush2.msra.mxu0 0.0
  %184 = vmatprep.subr.mxu0 0.0
  %185 = vmatpush2.msra.mxu0 0.0
  %186 = vmatprep.subr.mxu0 0.0
  %187 = vmatpush2.msra.mxu0 0.0
  %188 = vmatprep.subr.mxu0 0.0
  %189 = vmatpush2.msra.mxu0 0.0
  %190 = vmatprep.mubr.f32.mxu0 0.0
  %191 = vmatmul.mubr.f32.gmra.mxu0 %v120
  %v192 = vpop.f32.mrf.mxu0
  %v193 = vadd.f32 0.0, %v192
  %v194 = vpop.f32.mrf.mxu0
  %195 = vdwg.mxu0
  %v196 = vmul.f32 %v29, %v193
  %197 = vmatprep.subr.mxu0 0.0
  %198 = vmatpush1.msra.mxu0 0.0
  %199 = vmatprep.subr.mxu0 0.0
  %200 = vmatpush1.msra.mxu0 0.0
  %201 = vmatprep.subr.mxu0 0.0
  %202 = vmatpush1.msra.mxu0 0.0
  %203 = vmatprep.subr.mxu0 0.0
  %204 = vmatpush1.msra.mxu0 0.0
  %205 = vmatprep.subr.mxu0 0.0
  %206 = vmatpush1.msra.mxu0 0.0
  %207 = vmatprep.subr.mxu0 0.0
  %208 = vmatpush1.msra.mxu0 0.0
  %209 = vmatprep.subr.mxu0 0.0
  %210 = vmatpush1.msra.mxu0 0.0
  %211 = vmatprep.subr.mxu0 0.0
  %212 = vmatpush1.msra.mxu0 0.0
  %213 = vmatprep.subr.mxu0 0.0
  %214 = vmatpush1.msra.mxu0 0.0
  %215 = vmatprep.subr.mxu0 0.0
  %216 = vmatpush1.msra.mxu0 0.0
  %217 = vmatprep.subr.mxu0 0.0
  %218 = vmatpush1.msra.mxu0 0.0
  %219 = vmatprep.subr.mxu0 0.0
  %220 = vmatpush1.msra.mxu0 0.0
  %221 = vmatprep.subr.mxu0 0.0
  %222 = vmatpush1.msra.mxu0 0.0
  %223 = vmatprep.subr.mxu0 0.0
  %224 = vmatpush1.msra.mxu0 0.0
  %225 = vmatprep.subr.mxu0 0.0
  %226 = vmatpush1.msra.mxu0 0.0
  %227 = vmatprep.subr.mxu0 0.0
  %228 = vmatpush1.msra.mxu0 %v196
  %229 = vmatprep.subr.mxu0 0.0
  %230 = vmatpush2.msra.mxu0 0.0
  %231 = vmatprep.subr.mxu0 0.0
  %232 = vmatpush2.msra.mxu0 0.0
  %233 = vmatprep.subr.mxu0 0.0
  %234 = vmatpush2.msra.mxu0 0.0
  %235 = vmatprep.subr.mxu0 0.0
  %236 = vmatpush2.msra.mxu0 0.0
  %237 = vmatprep.subr.mxu0 0.0
  %238 = vmatpush2.msra.mxu0 0.0
  %239 = vmatprep.subr.mxu0 0.0
  %240 = vmatpush2.msra.mxu0 0.0
  %241 = vmatprep.subr.mxu0 0.0
  %242 = vmatpush2.msra.mxu0 0.0
  %243 = vmatprep.subr.mxu0 0.0
  %244 = vmatpush2.msra.mxu0 0.0
  %245 = vmatprep.subr.mxu0 0.0
  %246 = vmatpush2.msra.mxu0 0.0
  %247 = vmatprep.subr.mxu0 0.0
  %248 = vmatpush2.msra.mxu0 0.0
  %249 = vmatprep.subr.mxu0 0.0
  %250 = vmatpush2.msra.mxu0 0.0
  %251 = vmatprep.subr.mxu0 0.0
  %252 = vmatpush2.msra.mxu0 0.0
  %253 = vmatprep.subr.mxu0 0.0
  %254 = vmatpush2.msra.mxu0 0.0
  %255 = vmatprep.subr.mxu0 0.0
  %256 = vmatpush2.msra.mxu0 0.0
  %257 = vmatprep.subr.mxu0 0.0
  %258 = vmatpush2.msra.mxu0 0.0
  %259 = vmatprep.subr.mxu0 0.0
  %260 = vmatpush2.msra.mxu0 0.0
  %261 = vmatprep.mubr.f32.mxu0 0.0
  %262 = vmatmul.mubr.f32.gmra.mxu0 %v34
  %v263 = vpop.f32.mrf.mxu0
  %v264 = vadd.f32 0.0, %v263
  %v265 = vpop.f32.mrf.mxu0
  %266 = vdwg.mxu0
  %v267 = vmul.f32 %v29, %v264
  %v268 = vadd.f32 %v267, %v193
  %v269 = vld [vmem:[%s5] sm:$0x1]
  %v271 = vlaneseq
  %v272 = vshrl.u32 %v271, 7
  %v273 = vsub.s32 0, %v272
  %v274 = vrot.slane %v269, %v273
  %v276 = vadd.f32 %v268, %v274
  %vm277 = vcmask 15360
  %278 = vst.msk [vmem:[%s6] sm:$0xff] %vm277, %v276
  // Predicated region
  $region26: #{tpu_custom_call.1} parent=0 // pred_check
    _
  $region27: #{tpu_custom_call.1} parent=0 // pred_check_branch
    %280 = sbr.rel (0) target = $region29
  $region28: #{tpu_custom_call.1} parent=0 // pred_region
    _
  $region29: #{tpu_custom_call.1} parent=0 // pred_fallthru
    _
  // Predicated region
  $region30: #{tpu_custom_call.1} parent=0 // pred_check
    _
  $region31: #{tpu_custom_call.1} parent=0 // pred_check_branch
    %282 = sbr.rel (0) target = $region33
  $region32: #{tpu_custom_call.1} parent=0 // pred_region
    _
  $region33: #{tpu_custom_call.1} parent=0 // pred_fallthru
    _

</llo_original>
